<compile_context>
chip_gen: v5e
topology: v5e:2x2
jax: 0.10.0
libtpu: 0.0.40
codegen_flags: <defaults>
</compile_context>

<pallas_src>
import jax
import jax.numpy as jnp
from jax import lax
from jax.experimental import pallas as pl
from jax.experimental.pallas import tpu as pltpu

_LANE = 128
_TB_MAX = 8192       # (TB,14) block costs TB*512 B/buffer (lane pad 14->128)
_TARGET_STEPS = 4    # >=2 steps so v7x megacore + DMA pipelining both engage

# Contract the minor dim of both operands: W1 (8,14) . X (TB,14) -> (8, TB).
_NT_DIMS = (((1,), (1,)), ((), ()))


def _round_up(n, m):
    return ((n + m - 1) // m) * m


def _mlp_kernel(x_ref, w1_ref, b1_ref, w2_ref, b2_ref,
                w3_ref, b3_ref, w4_ref, b4_ref, o_ref):
    x = x_ref[...]                                        # (TB, 14), batch on sublanes
    # Layer 1 as an NT matmul: batch lands on the lane axis without any
    # wrapper-side transpose (the operand re-layout happens on chip).
    h = lax.dot_general(w1_ref[...], x, _NT_DIMS,
                        preferred_element_type=jnp.float32)   # (8, TB)
    h = jnp.maximum(h + b1_ref[...], 0.0)
    h = jnp.dot(w2_ref[...], h, preferred_element_type=jnp.float32)
    h = jnp.maximum(h + b2_ref[...], 0.0)
    h = jnp.dot(w3_ref[...], h, preferred_element_type=jnp.float32)
    h = jnp.maximum(h + b3_ref[...], 0.0)
    z = jnp.dot(w4_ref[...], h, preferred_element_type=jnp.float32) + b4_ref[...]
    # sigmoid = 1 / (1 + exp(-z)); exp and reciprocal both use the EUP slot.
    o_ref[...] = pl.reciprocal(1.0 + jnp.exp(-z))        # exact; parity w/ torch


def mlp_forward(x, params):
    """x: (B, 14) float32. Returns (B,) float32 (Flatten(start_dim=0))."""
    B, F = x.shape
    assert F == 14, F
    w1, b1, w2, b2, w3, b3, w4, b4 = params
    f32 = jnp.float32

    # Pad hidden width 7 -> 8 (sublane-aligned); zero rows/cols are exact no-ops.
    w1p = jnp.zeros((8, 14), f32).at[:7, :].set(w1.astype(f32))
    b1p = jnp.zeros((8, 1), f32).at[:7, 0].set(b1.astype(f32))
    w2p = jnp.zeros((8, 8), f32).at[:7, :7].set(w2.astype(f32))
    b2p = jnp.zeros((8, 1), f32).at[:7, 0].set(b2.astype(f32))
    w3p = jnp.zeros((8, 8), f32).at[:7, :7].set(w3.astype(f32))
    b3p = jnp.zeros((8, 1), f32).at[:7, 0].set(b3.astype(f32))
    w4p = jnp.zeros((1, 8), f32).at[:, :7].set(w4.astype(f32))
    b4p = b4.reshape(1, 1).astype(f32)

    # Batch tile: multiple of 128, capped at 8192, targeting >=4 grid steps.
    # Ragged last tile (and B not a multiple of 128) is handled by Pallas'
    # block clamping; garbage batch rows never mix across lanes and the
    # output store is clamped to the real (1, B) extent.
    if B <= _LANE:
        TB = B                      # single exact tile (all blocks full-dim)
    else:
        TB = min(_TB_MAX, _round_up(pl.cdiv(B, _TARGET_STEPS), _LANE))
    num_tiles = pl.cdiv(B, TB)

    const = lambda i: (0, 0)        # weights/biases stay VMEM-resident

    out = pl.pallas_call(
        _mlp_kernel,
        out_shape=jax.ShapeDtypeStruct((1, B), f32),
        grid=(num_tiles,),
        in_specs=[
            pl.BlockSpec((TB, 14), lambda i: (i, 0)),   # x: one contiguous HBM pass
            pl.BlockSpec((8, 14), const),               # w1
            pl.BlockSpec((8, 1), const),                # b1
            pl.BlockSpec((8, 8), const),                # w2
            pl.BlockSpec((8, 1), const),                # b2
            pl.BlockSpec((8, 8), const),                # w3
            pl.BlockSpec((8, 1), const),                # b3
            pl.BlockSpec((1, 8), const),                # w4
            pl.BlockSpec((1, 1), const),                # b4
        ],
        out_specs=pl.BlockSpec((1, TB), lambda i: (0, i)),  # lane-dense output
        compiler_params=pltpu.CompilerParams(
            dimension_semantics=("parallel",),
        ),
    )(x.astype(f32), w1p, b1p, w2p, b2p, w3p, b3p, w4p, b4p)

    # (1, B) -> Flatten(start_dim=0) gives (B,)
    return out[0]


def init_params(key):
    """Deterministic PyTorch-style uniform init (nn.Linear layout: W (out,in), b (out,))."""
    dims = [(14, 7), (7, 7), (7, 7), (7, 1)]
    params = []
    keys = jax.random.split(key, 2 * len(dims))
    for li, (fan_in, fan_out) in enumerate(dims):
        bound = 1.0 / jnp.sqrt(jnp.float32(fan_in))
        w = jax.random.uniform(keys[2 * li], (fan_out, fan_in),
                               minval=-bound, maxval=bound, dtype=jnp.float32)
        b = jax.random.uniform(keys[2 * li + 1], (fan_out,),
                               minval=-bound, maxval=bound, dtype=jnp.float32)
        params += [w, b]
    return tuple(params)


def _reference(x, params):
    """Pure-JAX reference matching the PyTorch module (y = x @ W.T + b)."""
    w1, b1, w2, b2, w3, b3, w4, b4 = params
    h = jnp.maximum(x @ w1.T + b1, 0.0)
    h = jnp.maximum(h @ w2.T + b2, 0.0)
    h = jnp.maximum(h @ w3.T + b3, 0.0)
    return jax.nn.sigmoid(h @ w4.T + b4).reshape(-1)


if __name__ == "__main__":
    key = jax.random.PRNGKey(0)
    k_x, k_p = jax.random.split(key)
    params = init_params(k_p)

    # Small batch (single tile, all blocks exactly full-dim).
    B = 8
    x = jax.random.normal(k_x, (B, 14), dtype=jnp.float32)
    y = jax.block_until_ready(mlp_forward(x, params))
    y_ref = _reference(x, params)
    assert y.shape == (B,), y.shape
    assert jnp.allclose(y, y_ref, atol=1e-4, rtol=1e-4), (y, y_ref)

    # Larger ragged batch: multi-step grid, clamped last tile, pipelined DMA.
    B2 = 2048 + 37
    x2 = jax.random.normal(k_x, (B2, 14), dtype=jnp.float32)
    y2 = jax.block_until_ready(mlp_forward(x2, params))
    y2_ref = _reference(x2, params)
    assert y2.shape == (B2,), y2.shape
    assert jnp.allclose(y2, y2_ref, atol=1e-4, rtol=1e-4)

    print("KERNEL_OK")
</pallas_src>

<mosaic_0001>
module attributes {stable_mosaic.version = 11 : i64} {
  func.func @_mlp_kernel(%arg0: i32, %arg1: memref<8x14xf32, #tpu.memory_space<vmem>>, %arg2: memref<8x14xf32, #tpu.memory_space<vmem>>, %arg3: memref<8x1xf32, #tpu.memory_space<vmem>>, %arg4: memref<8x8xf32, #tpu.memory_space<vmem>>, %arg5: memref<8x1xf32, #tpu.memory_space<vmem>>, %arg6: memref<8x8xf32, #tpu.memory_space<vmem>>, %arg7: memref<8x1xf32, #tpu.memory_space<vmem>>, %arg8: memref<1x8xf32, #tpu.memory_space<vmem>>, %arg9: memref<1x1xf32, #tpu.memory_space<vmem>>, %arg10: memref<1x8xf32, #tpu.memory_space<vmem>>) attributes {dimension_semantics = [#tpu.dimension_semantics<parallel>], iteration_bounds = array<i64: 1>, scalar_prefetch = 0 : i64, scratch_operands = 0 : i64, tpu.core_type = #tpu.core_type<tc>, window_params = [{transform_indices = @transform_0, window_bounds = array<i64: 8, 14>}, {pipeline_mode = #tpu.pipeline_mode<synchronous>, transform_indices = @transform_1, window_bounds = array<i64: 8, 14>}, {pipeline_mode = #tpu.pipeline_mode<synchronous>, transform_indices = @transform_2, window_bounds = array<i64: 8, 1>}, {pipeline_mode = #tpu.pipeline_mode<synchronous>, transform_indices = @transform_3, window_bounds = array<i64: 8, 8>}, {pipeline_mode = #tpu.pipeline_mode<synchronous>, transform_indices = @transform_4, window_bounds = array<i64: 8, 1>}, {pipeline_mode = #tpu.pipeline_mode<synchronous>, transform_indices = @transform_5, window_bounds = array<i64: 8, 8>}, {pipeline_mode = #tpu.pipeline_mode<synchronous>, transform_indices = @transform_6, window_bounds = array<i64: 8, 1>}, {pipeline_mode = #tpu.pipeline_mode<synchronous>, transform_indices = @transform_7, window_bounds = array<i64: 1, 8>}, {pipeline_mode = #tpu.pipeline_mode<synchronous>, transform_indices = @transform_8, window_bounds = array<i64: 1, 1>}, {transform_indices = @transform_9, window_bounds = array<i64: 1, 8>}]} {
    %c0 = arith.constant 0 : index
    %c0_0 = arith.constant 0 : index
    %0 = vector.load %arg1[%c0, %c0_0] : memref<8x14xf32, #tpu.memory_space<vmem>>, vector<8x14xf32>
    %c0_1 = arith.constant 0 : index
    %c0_2 = arith.constant 0 : index
    %1 = vector.load %arg2[%c0_1, %c0_2] : memref<8x14xf32, #tpu.memory_space<vmem>>, vector<8x14xf32>
    %cst = arith.constant dense<0.000000e+00> : vector<8x8xf32>
    %2 = tpu.matmul %1, %0, %cst {dimension_numbers = #tpu.dot_dimension_numbers<[1], [1], [0], [0], [0, 0, 1, 0], [], []>} : vector<8x14xf32>, vector<8x14xf32>, vector<8x8xf32> -> vector<8x8xf32>
    %c0_3 = arith.constant 0 : index
    %c0_4 = arith.constant 0 : index
    %3 = vector.load %arg3[%c0_3, %c0_4] : memref<8x1xf32, #tpu.memory_space<vmem>>, vector<8x1xf32>
    %4 = vector.broadcast %3 : vector<8x1xf32> to vector<8x8xf32>
    %5 = arith.addf %2, %4 : vector<8x8xf32>
    %cst_5 = arith.constant 0.000000e+00 : f32
    %6 = vector.broadcast %cst_5 : f32 to vector<8x8xf32>
    %7 = arith.maximumf %5, %6 : vector<8x8xf32>
    %c0_6 = arith.constant 0 : index
    %c0_7 = arith.constant 0 : index
    %8 = vector.load %arg4[%c0_6, %c0_7] : memref<8x8xf32, #tpu.memory_space<vmem>>, vector<8x8xf32>
    %cst_8 = arith.constant dense<0.000000e+00> : vector<8x8xf32>
    %9 = tpu.matmul %8, %7, %cst_8 {dimension_numbers = #tpu.dot_dimension_numbers<[1], [0], [0], [1], [0, 0, 1, 1], [], []>} : vector<8x8xf32>, vector<8x8xf32>, vector<8x8xf32> -> vector<8x8xf32>
    %c0_9 = arith.constant 0 : index
    %c0_10 = arith.constant 0 : index
    %10 = vector.load %arg5[%c0_9, %c0_10] : memref<8x1xf32, #tpu.memory_space<vmem>>, vector<8x1xf32>
    %11 = vector.broadcast %10 : vector<8x1xf32> to vector<8x8xf32>
    %12 = arith.addf %9, %11 : vector<8x8xf32>
    %cst_11 = arith.constant 0.000000e+00 : f32
    %13 = vector.broadcast %cst_11 : f32 to vector<8x8xf32>
    %14 = arith.maximumf %12, %13 : vector<8x8xf32>
    %c0_12 = arith.constant 0 : index
    %c0_13 = arith.constant 0 : index
    %15 = vector.load %arg6[%c0_12, %c0_13] : memref<8x8xf32, #tpu.memory_space<vmem>>, vector<8x8xf32>
    %cst_14 = arith.constant dense<0.000000e+00> : vector<8x8xf32>
    %16 = tpu.matmul %15, %14, %cst_14 {dimension_numbers = #tpu.dot_dimension_numbers<[1], [0], [0], [1], [0, 0, 1, 1], [], []>} : vector<8x8xf32>, vector<8x8xf32>, vector<8x8xf32> -> vector<8x8xf32>
    %c0_15 = arith.constant 0 : index
    %c0_16 = arith.constant 0 : index
    %17 = vector.load %arg7[%c0_15, %c0_16] : memref<8x1xf32, #tpu.memory_space<vmem>>, vector<8x1xf32>
    %18 = vector.broadcast %17 : vector<8x1xf32> to vector<8x8xf32>
    %19 = arith.addf %16, %18 : vector<8x8xf32>
    %cst_17 = arith.constant 0.000000e+00 : f32
    %20 = vector.broadcast %cst_17 : f32 to vector<8x8xf32>
    %21 = arith.maximumf %19, %20 : vector<8x8xf32>
    %c0_18 = arith.constant 0 : index
    %c0_19 = arith.constant 0 : index
    %22 = vector.load %arg8[%c0_18, %c0_19] : memref<1x8xf32, #tpu.memory_space<vmem>>, vector<1x8xf32>
    %cst_20 = arith.constant dense<0.000000e+00> : vector<1x8xf32>
    %23 = tpu.matmul %22, %21, %cst_20 {dimension_numbers = #tpu.dot_dimension_numbers<[1], [0], [0], [1], [0, 0, 1, 1], [], []>} : vector<1x8xf32>, vector<8x8xf32>, vector<1x8xf32> -> vector<1x8xf32>
    %c0_21 = arith.constant 0 : index
    %c0_22 = arith.constant 0 : index
    %24 = vector.load %arg9[%c0_21, %c0_22] : memref<1x1xf32, #tpu.memory_space<vmem>>, vector<1x1xf32>
    %25 = vector.broadcast %24 : vector<1x1xf32> to vector<1x8xf32>
    %26 = arith.addf %23, %25 : vector<1x8xf32>
    %cst_23 = arith.constant 0.000000e+00 : f32
    %27 = vector.broadcast %cst_23 : f32 to vector<1x8xf32>
    %28 = arith.subf %27, %26 : vector<1x8xf32>
    %29 = math.exp %28 : vector<1x8xf32>
    %cst_24 = arith.constant 1.000000e+00 : f32
    %30 = vector.broadcast %cst_24 : f32 to vector<1x8xf32>
    %31 = arith.addf %30, %29 : vector<1x8xf32>
    %32 = tpu.reciprocal %31 : vector<1x8xf32> -> vector<1x8xf32>
    %c0_25 = arith.constant 0 : index
    %c0_26 = arith.constant 0 : index
    %33 = vector.load %arg10[%c0_25, %c0_26] : memref<1x8xf32, #tpu.memory_space<vmem>>, vector<1x8xf32>
    tpu.vector_store %arg10[%c0_25, %c0_26], %32 {strides = array<i32>} : memref<1x8xf32, #tpu.memory_space<vmem>>, vector<1x8xf32>,
    return
  }
  func.func @transform_0(%arg0: i32) -> (i32, i32) {
    %c0_i32 = arith.constant 0 : i32
    %c0_i32_0 = arith.constant 0 : i32
    return %arg0, %c0_i32 : i32, i32
  }
  func.func @transform_1(%arg0: i32) -> (i32, i32) {
    %c0_i32 = arith.constant 0 : i32
    %c0_i32_0 = arith.constant 0 : i32
    %c0_i32_1 = arith.constant 0 : i32
    return %c0_i32, %c0_i32_0 : i32, i32
  }
  func.func @transform_2(%arg0: i32) -> (i32, i32) {
    %c0_i32 = arith.constant 0 : i32
    %c0_i32_0 = arith.constant 0 : i32
    %c0_i32_1 = arith.constant 0 : i32
    return %c0_i32, %c0_i32_0 : i32, i32
  }
  func.func @transform_3(%arg0: i32) -> (i32, i32) {
    %c0_i32 = arith.constant 0 : i32
    %c0_i32_0 = arith.constant 0 : i32
    %c0_i32_1 = arith.constant 0 : i32
    return %c0_i32, %c0_i32_0 : i32, i32
  }
  func.func @transform_4(%arg0: i32) -> (i32, i32) {
    %c0_i32 = arith.constant 0 : i32
    %c0_i32_0 = arith.constant 0 : i32
    %c0_i32_1 = arith.constant 0 : i32
    return %c0_i32, %c0_i32_0 : i32, i32
  }
  func.func @transform_5(%arg0: i32) -> (i32, i32) {
    %c0_i32 = arith.constant 0 : i32
    %c0_i32_0 = arith.constant 0 : i32
    %c0_i32_1 = arith.constant 0 : i32
    return %c0_i32, %c0_i32_0 : i32, i32
  }
  func.func @transform_6(%arg0: i32) -> (i32, i32) {
    %c0_i32 = arith.constant 0 : i32
    %c0_i32_0 = arith.constant 0 : i32
    %c0_i32_1 = arith.constant 0 : i32
    return %c0_i32, %c0_i32_0 : i32, i32
  }
  func.func @transform_7(%arg0: i32) -> (i32, i32) {
    %c0_i32 = arith.constant 0 : i32
    %c0_i32_0 = arith.constant 0 : i32
    %c0_i32_1 = arith.constant 0 : i32
    return %c0_i32, %c0_i32_0 : i32, i32
  }
  func.func @transform_8(%arg0: i32) -> (i32, i32) {
    %c0_i32 = arith.constant 0 : i32
    %c0_i32_0 = arith.constant 0 : i32
    %c0_i32_1 = arith.constant 0 : i32
    return %c0_i32, %c0_i32_0 : i32, i32
  }
  func.func @transform_9(%arg0: i32) -> (i32, i32) {
    %c0_i32 = arith.constant 0 : i32
    %c0_i32_0 = arith.constant 0 : i32
    return %c0_i32, %arg0 : i32, i32
  }
}

</mosaic_0001>

<llo_original>
// kernel: tpu_custom_call.1
$region0: #{tpu_custom_call.1}
  #allocation0 [shape = 'u32[]', space=smem, size = 0x4, offset = 0x4, fixed_abs, tag = 'smem constant byte address 0x4 - core index']
  #allocation1 [shape = 'u32[72,128]{1,0:T(1,128)}', space=vmem, size = 0x9000, scoped, tag = 'internal scratch']
  #allocation2 [shape = 'f32[1,1]{1,0:T(1,128)S(1)}', space=vmem, size = 0x200, scoped, tag = 'scoped memory for tpu_custom_call.1']
  %s0 = inlined_call_operand.vmem [shape: f32[8,14], index: 0, kind: input, shape index: {}]
  %s1 = inlined_call_operand.vmem [shape: f32[8,14], index: 1, kind: input, shape index: {}]
  %s2 = inlined_call_operand.vmem [shape: f32[8,1], index: 2, kind: input, shape index: {}]
  %s3 = inlined_call_operand.vmem [shape: f32[8,8], index: 3, kind: input, shape index: {}]
  %s4 = inlined_call_operand.vmem [shape: f32[8,1], index: 4, kind: input, shape index: {}]
  %s5 = inlined_call_operand.hbm [shape: f32[8,8], index: 5, kind: input, shape index: {}]
  %s6 = inlined_call_operand.vmem [shape: f32[8,1], index: 6, kind: input, shape index: {}]
  %s7 = inlined_call_operand.vmem [shape: f32[1,8], index: 7, kind: input, shape index: {}]
  %s8 = inlined_call_operand.<no memory space> [shape: f32[1,1], index: 8, kind: input, shape index: {}]
  %s9 = inlined_call_operand.hbm [shape: f32[1,8], index: 9, kind: output, shape index: {}]
  %s10 = sld [smem:[#allocation0]]
  $region50: #{tpu_custom_call.1} parent=0
    _
  %s12 = ssub.s32 1, %s10
  %s13 = scalar_select 0, %s12, %s10
  %v14 = vstv %s8
  %15 = vst [vmem:[#allocation2] sm:$0x1] %v14
  $region1: #{tpu_custom_call.1} parent=0
    #allocation3 [shape = 'u8[4096]{0}', space=vmem, size = 0x1000, scoped, tag = 'input window, operand 5, single buffered']
    #allocation4 [shape = 's32[1]{0}', space=sflag, size = 0x4, scoped, tag = 'scoped memory for tpu_custom_call.1']
    #allocation5 [shape = 's32[1]{0}', space=sflag, size = 0x4, scoped, tag = 'scoped memory for tpu_custom_call.1']
    #allocation6 [shape = 'u8[512]{0}', space=vmem, size = 0x400, scoped, tag = 'output window, operand 0, single buffered']
    %16 = vsyncpa [#allocation4], 0
    %17 = vsyncpa [#allocation5], 0
    // Predicated region
    $region2: #{tpu_custom_call.1} parent=1 // pred_check
      _
    $region3: #{tpu_custom_call.1} parent=1 // pred_check_branch
      %19 = sbr.rel (0) target = $region5
    $region4: #{tpu_custom_call.1} parent=1 // pred_region
      _
    $region5: #{tpu_custom_call.1} parent=1 // pred_fallthru
      _
    // Predicated region
    $region6: #{tpu_custom_call.1} parent=1 // pred_check
      _
    $region7: #{tpu_custom_call.1} parent=1 // pred_check_branch
      %21 = sbr.rel (0) target = $region9
    $region8: #{tpu_custom_call.1} parent=1 // pred_region
      _
    $region9: #{tpu_custom_call.1} parent=1 // pred_fallthru
      _
    // Predicated region
    $region10: #{tpu_custom_call.1} parent=1 // pred_check
      _
    $region11: #{tpu_custom_call.1} parent=1 // pred_check_branch
      %23 = sbr.rel (0) target = $region13
    $region12: #{tpu_custom_call.1} parent=1 // pred_region
      _
    $region13: #{tpu_custom_call.1} parent=1 // pred_fallthru
      _
    // Predicated region
    $region14: #{tpu_custom_call.1} parent=1 // pred_check
      _
    $region15: #{tpu_custom_call.1} parent=1 // pred_check_branch
      %25 = sbr.rel (0) target = $region17
    $region16: #{tpu_custom_call.1} parent=1 // pred_region
      _
    $region17: #{tpu_custom_call.1} parent=1 // pred_fallthru
      _
    // Predicated region
    $region18: #{tpu_custom_call.1} parent=1 // pred_check
      _
    $region19: #{tpu_custom_call.1} parent=1 // pred_check_branch
      %27 = sbr.rel (0) target = $region21
    $region20: #{tpu_custom_call.1} parent=1 // pred_region
      _
    $region21: #{tpu_custom_call.1} parent=1 // pred_fallthru
      _
    // Predicated region
    $region22: #{tpu_custom_call.1} parent=1 // pred_check
      _
    $region23: #{tpu_custom_call.1} parent=1 // pred_check_branch
      %29 = sbr.rel (0) target = $region25
    $region24: #{tpu_custom_call.1} parent=1 // pred_region
      %31 = vsyncadd [#allocation4], 0
      %s33 = sshll.u32 %s5, 4
      %s34 = int_to_ptr.hbm [resolvable:$true] %s33
      %s35 = sshll.u32 [#allocation3], 4
      %s36 = int_to_ptr.vmem [resolvable:$true] %s35
      %38 = dma.hbm_to_vmem [thread:$0]  %s34, 128, %s36, [#allocation4]
    $region25: #{tpu_custom_call.1} parent=1 // pred_fallthru
      _
    // Predicated region
    $region26: #{tpu_custom_call.1} parent=1 // pred_check
      _
    $region27: #{tpu_custom_call.1} parent=1 // pred_check_branch
      %40 = sbr.rel (0) target = $region29
    $region28: #{tpu_custom_call.1} parent=1 // pred_region
      _
    $region29: #{tpu_custom_call.1} parent=1 // pred_fallthru
      _
    // Predicated region
    $region30: #{tpu_custom_call.1} parent=1 // pred_check
      _
    $region31: #{tpu_custom_call.1} parent=1 // pred_check_branch
      %42 = sbr.rel (0) target = $region33
    $region32: #{tpu_custom_call.1} parent=1 // pred_region
      _
    $region33: #{tpu_custom_call.1} parent=1 // pred_fallthru
      _
    // Predicated region
    $region34: #{tpu_custom_call.1} parent=1 // pred_check
      _
    $region35: #{tpu_custom_call.1} parent=1 // pred_check_branch
      %44 = sbr.rel (0) target = $region37
    $region36: #{tpu_custom_call.1} parent=1 // pred_region
      _
    $region37: #{tpu_custom_call.1} parent=1 // pred_fallthru
      _
    // Predicated region
    $region38: #{tpu_custom_call.1} parent=1 // pred_check
      _
    $region39: #{tpu_custom_call.1} parent=1 // pred_check_branch
      %46 = sbr.rel (0) target = $region41
    $region40: #{tpu_custom_call.1} parent=1 // pred_region
      %48 = dma.done [#allocation4], 128
    $region41: #{tpu_custom_call.1} parent=1 // pred_fallthru
      _
    %v49 = vld [vmem:[%s0] sm:$0xff]
    %v50 = vld [vmem:[%s1] sm:$0xff]
    %v51 = vld [vmem:[%s2] sm:$0xff]
    %53 = vset.pattern.permute.xlu0 0
    %54 = vperm.xlu0 %53, %v51
    %v55 = vpop.permute.xlu0 %54
    %vm57 = vcmask 113664
    %v59 = vsel %vm57, %v50, 0
    %v62 = vsel %vm57, %v49, 0
    %64 = vmatpush.xpose.msra.mxu0 0.0
    %65 = vmatpush.xpose.msra.mxu0 0.0
    %66 = vmatpush.xpose.msra.mxu0 0.0
    %67 = vmatpush.xpose.msra.mxu0 0.0
    %68 = vmatpush.xpose.msra.mxu0 0.0
    %69 = vmatpush.xpose.msra.mxu0 0.0
    %70 = vmatpush.xpose.msra.mxu0 0.0
    %71 = vmatpush.xpose.msra.mxu0 0.0
    %72 = vmatpush.xpose.msra.mxu0 0.0
    %73 = vmatpush.xpose.msra.mxu0 0.0
    %74 = vmatpush.xpose.msra.mxu0 0.0
    %75 = vmatpush.xpose.msra.mxu0 0.0
    %76 = vmatpush.xpose.msra.mxu0 0.0
    %77 = vmatpush.xpose.msra.mxu0 0.0
    %78 = vmatpush.xpose.msra.mxu0 0.0
    %79 = vmatpush.xpose.msra.mxu0 %v62
    %80 = vmatmul.f32.gmra.mxu0 %v59
    %v81 = vpop.f32.mrf.mxu0
    %v82 = vadd.f32 %v55, %v81
    %83 = vdwg.mxu0
    %v84 = vmax.f32 %v82, 0.0
    %v85 = vld [vmem:[%s3] sm:$0xff]
    %v86 = vld [vmem:[%s4] sm:$0xff]
    %88 = vset.pattern.permute.xlu0 0
    %89 = vperm.xlu0 %88, %v86
    %v90 = vpop.permute.xlu0 %89
    %vm92 = vcmask 64512
    %v94 = vsel %vm92, %v85, 0
    %96 = vmatpush.msra.mxu0 0.0
    %97 = vmatpush.msra.mxu0 0.0
    %98 = vmatpush.msra.mxu0 0.0
    %99 = vmatpush.msra.mxu0 0.0
    %100 = vmatpush.msra.mxu0 0.0
    %101 = vmatpush.msra.mxu0 0.0
    %102 = vmatpush.msra.mxu0 0.0
    %103 = vmatpush.msra.mxu0 0.0
    %104 = vmatpush.msra.mxu0 0.0
    %105 = vmatpush.msra.mxu0 0.0
    %106 = vmatpush.msra.mxu0 0.0
    %107 = vmatpush.msra.mxu0 0.0
    %108 = vmatpush.msra.mxu0 0.0
    %109 = vmatpush.msra.mxu0 0.0
    %110 = vmatpush.msra.mxu0 0.0
    %111 = vmatpush.msra.mxu0 %v84
    %112 = vmatmul.f32.gmra.mxu0 %v94
    %v113 = vpop.f32.mrf.mxu0
    %v114 = vadd.f32 %v90, %v113
    %115 = vdwg.mxu0
    %v116 = vmax.f32 %v114, 0.0
    %v117 = vld [vmem:[#allocation3] sm:$0xff]
    %v118 = vld [vmem:[%s6] sm:$0xff]
    %120 = vset.pattern.permute.xlu0 0
    %121 = vperm.xlu0 %120, %v118
    %v122 = vpop.permute.xlu0 %121
    %v125 = vsel %vm92, %v117, 0
    %127 = vmatpush.msra.mxu0 0.0
    %128 = vmatpush.msra.mxu0 0.0
    %129 = vmatpush.msra.mxu0 0.0
    %130 = vmatpush.msra.mxu0 0.0
    %131 = vmatpush.msra.mxu0 0.0
    %132 = vmatpush.msra.mxu0 0.0
    %133 = vmatpush.msra.mxu0 0.0
    %134 = vmatpush.msra.mxu0 0.0
    %135 = vmatpush.msra.mxu0 0.0
    %136 = vmatpush.msra.mxu0 0.0
    %137 = vmatpush.msra.mxu0 0.0
    %138 = vmatpush.msra.mxu0 0.0
    %139 = vmatpush.msra.mxu0 0.0
    %140 = vmatpush.msra.mxu0 0.0
    %141 = vmatpush.msra.mxu0 0.0
    %142 = vmatpush.msra.mxu0 %v116
    %143 = vmatmul.f32.gmra.mxu0 %v125
    %v144 = vpop.f32.mrf.mxu0
    %v145 = vadd.f32 %v122, %v144
    %146 = vdwg.mxu0
    %v147 = vmax.f32 %v145, 0.0
    %v148 = vld [vmem:[%s7] sm:$0x1]
    %v149 = vld [vmem:[#allocation2] sm:$0x1]
    %151 = vset.pattern.permute.xlu0 0
    %152 = vperm.xlu0 %151, %v149
    %v153 = vpop.permute.xlu0 %152
    %v155 = vperm.slane %v153, 0
    %v157 = vsel %vm92, %v148, 0
    %159 = vmatpush.msra.mxu0 0.0
    %160 = vmatpush.msra.mxu0 0.0
    %161 = vmatpush.msra.mxu0 0.0
    %162 = vmatpush.msra.mxu0 0.0
    %163 = vmatpush.msra.mxu0 0.0
    %164 = vmatpush.msra.mxu0 0.0
    %165 = vmatpush.msra.mxu0 0.0
    %166 = vmatpush.msra.mxu0 0.0
    %167 = vmatpush.msra.mxu0 0.0
    %168 = vmatpush.msra.mxu0 0.0
    %169 = vmatpush.msra.mxu0 0.0
    %170 = vmatpush.msra.mxu0 0.0
    %171 = vmatpush.msra.mxu0 0.0
    %172 = vmatpush.msra.mxu0 0.0
    %173 = vmatpush.msra.mxu0 0.0
    %174 = vmatpush.msra.mxu0 %v147
    %175 = vmatmul.f32.gmra.mxu0 %v157
    %v176 = vpop.f32.mrf.mxu0
    %v177 = vadd.f32 %v155, %v176
    %178 = vdwg.mxu0
    %v179 = vsub.f32 0.0, %v177
    %v180 = vmul.f32 %v179, 1.442695
    %v181 = vpow.pop %v180
    %v182 = vadd.f32 %v181, 1.0
    %v183 = vrcp.pop %v182
    %v184 = vmul.f32 %v182, %v183
    %v185 = vsub.f32 1.0, %v184
    %v186 = vmul.f32 %v183, %v185
    %v187 = vadd.f32 %v183, %v186
    %vm188 = vweird.f32 %v182
    %vm189 = vweird.f32 %v183
    %vm190 = vmor %vm188, %vm189
    %v191 = vsel %vm190, %v183, %v187
    %v192 = vand.u32 2147483647, %v182
    %vm193 = vcmp.eq.f32.partialorder %v192, 8.507059e+37
    %v194 = vand.u32 %v182, 2147483648
    %v195 = vor.u32 1.1754944e-38, %v194
    %v196 = vsel %vm193, %v195, %v191
    %vm197 = vcmask 57344
    %198 = vst.msk [vmem:[#allocation6] sm:$0x1] %vm197, %v196
    // Predicated region
    $region42: #{tpu_custom_call.1} parent=1 // pred_check
      _
    $region43: #{tpu_custom_call.1} parent=1 // pred_check_branch
      %200 = sbr.rel (0) target = $region45
    $region44: #{tpu_custom_call.1} parent=1 // pred_region
      %202 = vsyncadd [#allocation5], 0
      %s204 = sshll.u32 [#allocation6], 4
      %s205 = int_to_ptr.vmem [resolvable:$true] %s204
      %s206 = sshll.u32 %s9, 4
      %s207 = int_to_ptr.hbm [resolvable:$true] %s206
      %209 = dma.vmem_to_hbm [thread:$0]  %s205, 16, %s207, [#allocation5]
    $region45: #{tpu_custom_call.1} parent=1 // pred_fallthru
      _
    // Predicated region
    $region46: #{tpu_custom_call.1} parent=1 // pred_check
      _
    $region47: #{tpu_custom_call.1} parent=1 // pred_check_branch
      %211 = sbr.rel (0) target = $region49
    $region48: #{tpu_custom_call.1} parent=1 // pred_region
      %213 = dma.done [#allocation5], 16
    $region49: #{tpu_custom_call.1} parent=1 // pred_fallthru
      _
    %214 = vsyncpa [#allocation4], 1
    %215 = vsyncpa [#allocation5], 1

</llo_original>
